<compile_context>
chip_gen: v6e
topology: v6e:2x2x1
jax: 0.10.0
libtpu: 0.0.40
codegen_flags: <defaults>
</compile_context>

<pallas_src>
import functools

import numpy as np
import jax
import jax.numpy as jnp
from jax.experimental import pallas as pl
from jax.experimental.pallas import tpu as pltpu

V_TH = 1.0  # IF firing threshold

# Keep W resident in VMEM only if it fits comfortably even on v7x (64 MiB VMEM).
_RESIDENT_W_BUDGET_BYTES = 40 * 1024 * 1024


# ----------------------------------------------------------------------------
# Fused multi-timestep kernel: W resident in VMEM, state carried on-chip.
# ----------------------------------------------------------------------------
def fused_kernel(outs_ref, w_ref, inp_ref, v_ref, spikes_ref, vout_ref, *,
                 num_steps):
    w = w_ref[...]          # (AN, AN) bf16, stays in VMEM for all timesteps
    inp = inp_ref[...]      # (1, AN) f32

    def body(_, carry):
        outs, v = carry
        # spikes are exactly 0/1 -> bf16 cast is exact; accumulate in f32.
        ain = jnp.dot(outs.astype(w.dtype), w,
                      preferred_element_type=jnp.float32) + inp
        v_new = v + ain
        # TODO(synk): IFNodev1 is not defined in the source file; a standard
        # integrate-and-fire neuron (spike when v >= V_TH, hard reset to 0)
        # is assumed.
        spike = (v_new >= V_TH).astype(jnp.float32)
        return spike, v_new * (1.0 - spike)

    outs, v = jax.lax.fori_loop(0, num_steps, body,
                                (outs_ref[...], v_ref[...]))
    spikes_ref[...] = outs
    vout_ref[...] = v


def run_fused(outs, w, inp_full, v, num_steps):
    """Run `num_steps` dt with W kept resident in VMEM (single pallas_call)."""
    an = w.shape[0]
    # No grid: every operand is a single full VMEM block (lane-dense, untiled).
    return pl.pallas_call(
        functools.partial(fused_kernel, num_steps=num_steps),
        out_shape=(jax.ShapeDtypeStruct((1, an), jnp.float32),
                   jax.ShapeDtypeStruct((1, an), jnp.float32)),
        compiler_params=pltpu.CompilerParams(
            vmem_limit_bytes=56 * 1024 * 1024),
    )(outs, w, inp_full, v)


# ----------------------------------------------------------------------------
# Streaming fallback (W too big for VMEM): one pallas_call per dt, large tiles.
# ----------------------------------------------------------------------------
def stream_step_kernel(outs_ref, w_ref, inp_ref, v_ref,
                       spikes_ref, vout_ref, acc_ref):
    k = pl.program_id(1)

    @pl.when(k == 0)
    def _():
        acc_ref[...] = jnp.zeros_like(acc_ref)

    acc_ref[...] += jnp.dot(outs_ref[...].astype(w_ref.dtype), w_ref[...],
                            preferred_element_type=jnp.float32)

    @pl.when(k == pl.num_programs(1) - 1)
    def _():
        ain = acc_ref[...] + inp_ref[...]
        v_new = v_ref[...] + ain
        spike = (v_new >= V_TH).astype(jnp.float32)
        spikes_ref[...] = spike
        vout_ref[...] = v_new * (1.0 - spike)


def _pick_tile(an):
    # Largest 128-multiple tile (<=2048) that divides AN exactly; avoids any
    # silently-dropped remainder. 256-aligned sizes preferred for v6e/v7x MXU.
    for t in (2048, 1024, 512, 256, 128):
        if an % t == 0:
            return t
    raise ValueError("A*N must be a multiple of 128 (got %d)" % an)


def brain_step_streaming(outs, w, inp_full, v):
    """One dt, streaming W from HBM in large tiles (used when W > VMEM budget)."""
    an = w.shape[0]
    tn = tk = _pick_tile(an)
    grid = (an // tn, an // tk)
    return pl.pallas_call(
        stream_step_kernel,
        out_shape=(jax.ShapeDtypeStruct((1, an), jnp.float32),
                   jax.ShapeDtypeStruct((1, an), jnp.float32)),
        grid_spec=pltpu.PrefetchScalarGridSpec(
            num_scalar_prefetch=0,
            grid=grid,
            in_specs=[
                pl.BlockSpec((1, tk), lambda j, k: (0, k)),    # previous spikes
                pl.BlockSpec((tk, tn), lambda j, k: (k, j)),   # weight tile
                pl.BlockSpec((1, tn), lambda j, k: (0, j)),    # injected input
                pl.BlockSpec((1, tn), lambda j, k: (0, j)),    # membrane potential
            ],
            out_specs=(
                pl.BlockSpec((1, tn), lambda j, k: (0, j)),    # new spikes
                pl.BlockSpec((1, tn), lambda j, k: (0, j)),    # new membrane pot.
            ),
            scratch_shapes=[pltpu.VMEM((1, tn), jnp.float32)],
        ),
        compiler_params=pltpu.CompilerParams(
            # j is "parallel" so v7x's two TensorCores split the output axis.
            dimension_semantics=("parallel", "arbitrary"),
            vmem_limit_bytes=48 * 1024 * 1024),
    )(outs, w, inp_full, v)


# ----------------------------------------------------------------------------
# Dispatcher + helpers
# ----------------------------------------------------------------------------
def simulate(outs, w, inp_full, v, num_steps):
    """Run num_steps of the brain simulation, picking the best kernel path."""
    an = w.shape[0]
    if an % 128 != 0:
        raise ValueError("A*N must be a multiple of 128")
    w_bytes = an * an * w.dtype.itemsize
    if w_bytes <= _RESIDENT_W_BUDGET_BYTES:
        return run_fused(outs, w, inp_full, v, num_steps)

    # W too large for VMEM: stream it once per dt.
    # TODO(synk): cross-TensorCore splitting of the fused (resident-W) path
    # would need per-step core barriers (pl.core_map); not implemented.
    def body(_, carry):
        o, vv = carry
        return brain_step_streaming(o, w, inp_full, vv)

    return jax.lax.fori_loop(0, num_steps, body, (outs, v))


def build_weights(key, asz, nsz):
    """Deterministic synthetic connectivity (replaces file-loaded conn+connMat)."""
    k1, k2, k3 = jax.random.split(key, 3)
    conn = jax.random.uniform(k1, (asz, asz), jnp.float32)
    conn = jnp.where(jax.random.uniform(k2, (asz, asz)) > 0.7, conn, 0.0)
    conn = conn * (1.0 - jnp.eye(asz, dtype=jnp.float32))  # no self-connection
    blocks = jax.random.uniform(k3, (asz, asz, nsz, nsz), jnp.float32) * 0.5
    mask = (conn > 0.0).astype(jnp.float32)
    # W[src_area*N + src_neuron, tgt_area*N + tgt_neuron]
    w = (blocks * mask[:, :, None, None]).transpose(0, 2, 1, 3)
    w = w.reshape(asz * nsz, asz * nsz)
    # bf16 weights: spikes are exactly 0/1 so products are exact; f32 accumulation
    # preserves the sum. Halves HBM traffic / VMEM footprint of W.
    return w.astype(jnp.bfloat16)


def inject_input(inp, asz, nsz, inareas):
    """Scatter the external nsz-vector input into every area in `inareas`."""
    inp_full = jnp.zeros((1, asz * nsz), jnp.float32)
    for ii in inareas:
        inp_full = inp_full.at[0, ii * nsz:(ii + 1) * nsz].add(inp)
    return inp_full


def reference_run(outs, w, inp_full, v, num_steps):
    """Pure-JAX reference of the same num_steps dynamics."""
    w32 = w.astype(jnp.float32)
    for _ in range(num_steps):
        ain = outs @ w32 + inp_full
        v = v + ain
        spike = (v >= V_TH).astype(jnp.float32)
        outs = spike
        v = v * (1.0 - spike)
    return outs, v


if __name__ == "__main__":
    asz, nsz = 16, 8            # A*N = 128 neurons total (small test shapes)
    inareas = [5]               # matches module default inareas=[5]
    num_steps = 3

    key = jax.random.PRNGKey(0)
    kw, ki = jax.random.split(key)

    w = build_weights(kw, asz, nsz)                          # (128, 128) bf16
    ext_input = jax.random.uniform(ki, (nsz,), jnp.float32) * 2.0
    inp_full = inject_input(ext_input, asz, nsz, inareas)    # (1, 128)

    an = asz * nsz
    outs0 = jnp.zeros((1, an), jnp.float32)                  # self.outs in __init__
    v0 = jnp.zeros((1, an), jnp.float32)                     # IF membrane potentials

    # Main path: fused multi-timestep kernel with W resident in VMEM.
    run = jax.jit(simulate, static_argnames=("num_steps",))
    spikes, v = run(outs0, w, inp_full, v0, num_steps=num_steps)
    jax.block_until_ready((spikes, v))

    # Also exercise the streaming fallback kernel (used for very large A*N).
    step_stream = jax.jit(brain_step_streaming)
    o_s, v_s = outs0, v0
    for _ in range(num_steps):
        o_s, v_s = step_stream(o_s, w, inp_full, v_s)
    jax.block_until_ready((o_s, v_s))

    # Pure-JAX reference cross-check.
    o_r, v_r = reference_run(outs0, w, inp_full, v0, num_steps)

    assert np.allclose(np.asarray(spikes), np.asarray(o_r), atol=1e-4), \
        "fused kernel spikes differ from reference"
    assert np.allclose(np.asarray(v), np.asarray(v_r), atol=1e-3), \
        "fused kernel membrane potentials differ from reference"
    assert np.allclose(np.asarray(o_s), np.asarray(o_r), atol=1e-4), \
        "streaming kernel spikes differ from reference"
    assert np.allclose(np.asarray(v_s), np.asarray(v_r), atol=1e-3), \
        "streaming kernel membrane potentials differ from reference"

    print("KERNEL_OK")
</pallas_src>

<mosaic_0001>
module attributes {stable_mosaic.version = 11 : i64} {
  func.func @fused_kernel(%arg0: memref<1x128xf32, #tpu.memory_space<vmem>>, %arg1: memref<128x128xbf16, #tpu.memory_space<vmem>>, %arg2: memref<1x128xf32, #tpu.memory_space<vmem>>, %arg3: memref<1x128xf32, #tpu.memory_space<vmem>>, %arg4: memref<1x128xf32, #tpu.memory_space<vmem>>, %arg5: memref<1x128xf32, #tpu.memory_space<vmem>>) attributes {dimension_semantics = [], scalar_prefetch = 0 : i64, scratch_operands = 0 : i64, tpu.core_type = #tpu.core_type<tc>} {
    %c0 = arith.constant 0 : index
    %c0_0 = arith.constant 0 : index
    %0 = vector.load %arg1[%c0, %c0_0] : memref<128x128xbf16, #tpu.memory_space<vmem>>, vector<128x128xbf16>
    %c0_1 = arith.constant 0 : index
    %c0_2 = arith.constant 0 : index
    %1 = vector.load %arg2[%c0_1, %c0_2] : memref<1x128xf32, #tpu.memory_space<vmem>>, vector<1x128xf32>
    %c0_3 = arith.constant 0 : index
    %c0_4 = arith.constant 0 : index
    %2 = vector.load %arg0[%c0_3, %c0_4] : memref<1x128xf32, #tpu.memory_space<vmem>>, vector<1x128xf32>
    %c0_5 = arith.constant 0 : index
    %c0_6 = arith.constant 0 : index
    %3 = vector.load %arg3[%c0_5, %c0_6] : memref<1x128xf32, #tpu.memory_space<vmem>>, vector<1x128xf32>
    %c0_i32 = arith.constant 0 : i32
    %c3_i32 = arith.constant 3 : i32
    %4 = arith.addi %c0_i32, %c3_i32 : i32
    %c1_i32 = arith.constant 1 : i32
    %5:2 = scf.for %arg6 = %c0_i32 to %4 step %c1_i32 iter_args(%arg7 = %2, %arg8 = %3) -> (vector<1x128xf32>, vector<1x128xf32>)  : i32 {
      %8 = arith.truncf %arg7 : vector<1x128xf32> to vector<1x128xbf16>
      %cst = arith.constant dense<0.000000e+00> : vector<1x128xf32>
      %9 = tpu.matmul %8, %0, %cst {dimension_numbers = #tpu.dot_dimension_numbers<[1], [0], [0], [1], [0, 0, 1, 1], [], []>} : vector<1x128xbf16>, vector<128x128xbf16>, vector<1x128xf32> -> vector<1x128xf32>
      %10 = arith.addf %9, %1 : vector<1x128xf32>
      %11 = arith.addf %arg8, %10 : vector<1x128xf32>
      %cst_11 = arith.constant 1.000000e+00 : f32
      %12 = vector.broadcast %cst_11 : f32 to vector<1x128xf32>
      %13 = arith.cmpf oge, %11, %12 : vector<1x128xf32>
      %14 = arith.extui %13 : vector<1x128xi1> to vector<1x128xi32>
      %15 = arith.sitofp %14 : vector<1x128xi32> to vector<1x128xf32>
      %cst_12 = arith.constant 1.000000e+00 : f32
      %16 = vector.broadcast %cst_12 : f32 to vector<1x128xf32>
      %17 = arith.subf %16, %15 : vector<1x128xf32>
      %18 = arith.mulf %11, %17 : vector<1x128xf32>
      scf.yield %15, %18 : vector<1x128xf32>, vector<1x128xf32>
    }
    %c0_7 = arith.constant 0 : index
    %c0_8 = arith.constant 0 : index
    %6 = vector.load %arg4[%c0_7, %c0_8] : memref<1x128xf32, #tpu.memory_space<vmem>>, vector<1x128xf32>
    tpu.vector_store %arg4[%c0_7, %c0_8], %5#0 {strides = array<i32>} : memref<1x128xf32, #tpu.memory_space<vmem>>, vector<1x128xf32>,
    %c0_9 = arith.constant 0 : index
    %c0_10 = arith.constant 0 : index
    %7 = vector.load %arg5[%c0_9, %c0_10] : memref<1x128xf32, #tpu.memory_space<vmem>>, vector<1x128xf32>
    tpu.vector_store %arg5[%c0_9, %c0_10], %5#1 {strides = array<i32>} : memref<1x128xf32, #tpu.memory_space<vmem>>, vector<1x128xf32>,
    return
  }
}

</mosaic_0001>

<llo_original>
// kernel: simulate.1
$region0: #{simulate.1}
  #allocation0 [shape = 'u32[]', space=smem, size = 0x4, offset = 0x4, fixed_abs, tag = 'smem constant byte address 0x4 - core index']
  #allocation1 [shape = 'u32[144,128]{1,0:T(1,128)}', space=vmem, size = 0x12000, scoped, tag = 'internal scratch']
  %s0 = inlined_call_operand.hbm [shape: f32[1,128], index: 0, kind: input, shape index: {}]
  %s1 = inlined_call_operand.hbm [shape: bf16[128,128], index: 1, kind: input, shape index: {}]
  %s2 = inlined_call_operand.vmem [shape: f32[1,128], index: 2, kind: input, shape index: {}]
  %s3 = inlined_call_operand.vmem [shape: f32[1,128], index: 3, kind: input, shape index: {}]
  %s4 = inlined_call_operand.hbm [shape: f32[1,128], index: 4, kind: output, shape index: {0}]
  %s5 = inlined_call_operand.hbm [shape: f32[1,128], index: 5, kind: output, shape index: {1}]
  %6 = xla_tuple %s4, %s5
  %s7 = sld [smem:[#allocation0]]
  $region49: #{simulate.1} parent=0
    _
  %s9 = ssub.s32 1, %s7
  %s10 = scalar_select 0, %s9, %s7
  $region1: #{simulate.1} parent=0
    #allocation2 [shape = 'u8[512]{0}', space=vmem, size = 0x400, scoped, tag = 'input window, operand 0, single buffered']
    #allocation3 [shape = 's32[1]{0}', space=sflag, size = 0x4, scoped, tag = 'scoped memory for simulate.1']
    #allocation4 [shape = 's32[1]{0}', space=sflag, size = 0x4, scoped, tag = 'scoped memory for simulate.1']
    #allocation5 [shape = 'u8[32768]{0}', space=vmem, size = 0x8000, scoped, tag = 'input window, operand 1, single buffered']
    #allocation6 [shape = 's32[1]{0}', space=sflag, size = 0x4, scoped, tag = 'scoped memory for simulate.1']
    #allocation7 [shape = 'u8[512]{0}', space=vmem, size = 0x400, scoped, tag = 'output window, operand 0, single buffered']
    #allocation8 [shape = 'u8[512]{0}', space=vmem, size = 0x400, scoped, tag = 'output window, operand 1, single buffered']
    #allocation9 [shape = 's32[1]{0}', space=sflag, size = 0x4, scoped, tag = 'scoped memory for simulate.1']
    %11 = vsyncpa [#allocation3], 0
    %12 = vsyncpa [#allocation6], 0
    %13 = vsyncpa [#allocation4], 0
    %14 = vsyncpa [#allocation9], 0
    // Predicated region
    $region2: #{simulate.1} parent=1 // pred_check
      _
    $region3: #{simulate.1} parent=1 // pred_check_branch
      %16 = sbr.rel (0) target = $region5
    $region4: #{simulate.1} parent=1 // pred_region
      %s18 = ssub.s32 16, 16
      %19 = vsyncadd [#allocation3], %s18
      %s21 = sshll.u32 [#allocation2], 4
      %s22 = int_to_ptr.vmem [resolvable:$true] %s21
      %24 = dma.hbm_to_vmem [thread:$0]  %s0, 16, %s22, [#allocation3]
    $region5: #{simulate.1} parent=1 // pred_fallthru
      _
    // Predicated region
    $region6: #{simulate.1} parent=1 // pred_check
      _
    $region7: #{simulate.1} parent=1 // pred_check_branch
      %26 = sbr.rel (0) target = $region9
    $region8: #{simulate.1} parent=1 // pred_region
      %s28 = ssub.s32 1024, 1024
      %29 = vsyncadd [#allocation6], %s28
      %s30 = sshll.u32 [#allocation5], 4
      %s31 = int_to_ptr.vmem [resolvable:$true] %s30
      %36 = dma.hbm_to_vmem [thread:$0]  %s1, 1024, %s31, [#allocation6], 64, 64, 4
    $region9: #{simulate.1} parent=1 // pred_fallthru
      _
    // Predicated region
    $region10: #{simulate.1} parent=1 // pred_check
      _
    $region11: #{simulate.1} parent=1 // pred_check_branch
      %38 = sbr.rel (0) target = $region13
    $region12: #{simulate.1} parent=1 // pred_region
      _
    $region13: #{simulate.1} parent=1 // pred_fallthru
      _
    // Predicated region
    $region14: #{simulate.1} parent=1 // pred_check
      _
    $region15: #{simulate.1} parent=1 // pred_check_branch
      %40 = sbr.rel (0) target = $region17
    $region16: #{simulate.1} parent=1 // pred_region
      _
    $region17: #{simulate.1} parent=1 // pred_fallthru
      _
    // Predicated region
    $region18: #{simulate.1} parent=1 // pred_check
      _
    $region19: #{simulate.1} parent=1 // pred_check_branch
      %42 = sbr.rel (0) target = $region21
    $region20: #{simulate.1} parent=1 // pred_region
      %43 = dma.done [#allocation3], 16
    $region21: #{simulate.1} parent=1 // pred_fallthru
      _
    // Predicated region
    $region22: #{simulate.1} parent=1 // pred_check
      _
    $region23: #{simulate.1} parent=1 // pred_check_branch
      %45 = sbr.rel (0) target = $region25
    $region24: #{simulate.1} parent=1 // pred_region
      %46 = dma.done [#allocation6], 1024
    $region25: #{simulate.1} parent=1 // pred_fallthru
      _
    %v48 = vld [vmem:[#allocation5] sm:$0xf]
    %v49 = vld [vmem:[#allocation5 + $0x4] sm:$0xf]
    %v50 = vld [vmem:[#allocation5 + $0x8] sm:$0xf]
    %v51 = vld [vmem:[#allocation5 + $0xc] sm:$0xf]
    %v52 = vld [vmem:[#allocation5 + $0x10] sm:$0xf]
    %v53 = vld [vmem:[#allocation5 + $0x14] sm:$0xf]
    %v54 = vld [vmem:[#allocation5 + $0x18] sm:$0xf]
    %v55 = vld [vmem:[#allocation5 + $0x1c] sm:$0xf]
    %v56 = vld [vmem:[#allocation5 + $0x20] sm:$0xf]
    %v57 = vld [vmem:[#allocation5 + $0x24] sm:$0xf]
    %v58 = vld [vmem:[#allocation5 + $0x28] sm:$0xf]
    %v59 = vld [vmem:[#allocation5 + $0x2c] sm:$0xf]
    %v60 = vld [vmem:[#allocation5 + $0x30] sm:$0xf]
    %v61 = vld [vmem:[#allocation5 + $0x34] sm:$0xf]
    %v62 = vld [vmem:[#allocation5 + $0x38] sm:$0xf]
    %v63 = vld [vmem:[#allocation5 + $0x3c] sm:$0xf]
    %v64 = vld [vmem:[%s2] sm:$0x1]
    %v65 = vld [vmem:[#allocation2] sm:$0x1]
    %v66 = vld [vmem:[%s3] sm:$0x1]
    loop: start=0, step=1, limit=3
    $region26: #{simulate.1} parent=1 // loop_pre_header
      _
    $region27: #{simulate.1} parent=1 // loop_header
      %s68 = sphi 0, %s72
      %p69 = scmp.ge.s32.totalorder %s68, 3
      %v73 = vphi %v65, %v167
      %v74 = vphi %v66, %v169
    $region28: #{simulate.1} parent=1 // loop_header_branch
      %71 = sbr.rel (%p69) target = $region32
    $region29: #{simulate.1} parent=1 // loop_body
      %v75 = vpack.c.bf16 %v73, %v73
      %v92 = vunpack.c.l.b16 %v48
      %v93 = vunpack.c.l.b16 %v49
      %v94 = vunpack.c.l.b16 %v50
      %v95 = vunpack.c.l.b16 %v51
      %v96 = vunpack.c.l.b16 %v52
      %v97 = vunpack.c.l.b16 %v53
      %v98 = vunpack.c.l.b16 %v54
      %v99 = vunpack.c.l.b16 %v55
      %v100 = vunpack.c.l.b16 %v56
      %v101 = vunpack.c.l.b16 %v57
      %v102 = vunpack.c.l.b16 %v58
      %v103 = vunpack.c.l.b16 %v59
      %v104 = vunpack.c.l.b16 %v60
      %v105 = vunpack.c.l.b16 %v61
      %v106 = vunpack.c.l.b16 %v62
      %v107 = vunpack.c.l.b16 %v63
      %v108 = vpack.c.b16 %v93, %v92
      %v109 = vpack.c.b16 %v95, %v94
      %v110 = vpack.c.b16 %v97, %v96
      %v111 = vpack.c.b16 %v99, %v98
      %v112 = vpack.c.b16 %v101, %v100
      %v113 = vpack.c.b16 %v103, %v102
      %v114 = vpack.c.b16 %v105, %v104
      %v115 = vpack.c.b16 %v107, %v106
      %124 = vmatprep.subr.bf16.mxu0 0
      %125 = vmatpush1.bf16.msra.mxu0 %v115
      %126 = vmatprep.subr.bf16.mxu0 0
      %127 = vmatpush1.bf16.msra.mxu0 %v114
      %128 = vmatprep.subr.bf16.mxu0 0
      %129 = vmatpush1.bf16.msra.mxu0 %v113
      %130 = vmatprep.subr.bf16.mxu0 0
      %131 = vmatpush1.bf16.msra.mxu0 %v112
      %132 = vmatprep.subr.bf16.mxu0 0
      %133 = vmatpush1.bf16.msra.mxu0 %v111
      %134 = vmatprep.subr.bf16.mxu0 0
      %135 = vmatpush1.bf16.msra.mxu0 %v110
      %136 = vmatprep.subr.bf16.mxu0 0
      %137 = vmatpush1.bf16.msra.mxu0 %v109
      %138 = vmatprep.subr.bf16.mxu0 0
      %139 = vmatpush1.bf16.msra.mxu0 %v108
      %140 = vmatprep.subr.bf16.mxu0 0
      %141 = vmatpush2.bf16.msra.mxu0 0
      %142 = vmatprep.subr.bf16.mxu0 0
      %143 = vmatpush2.bf16.msra.mxu0 0
      %144 = vmatprep.subr.bf16.mxu0 0
      %145 = vmatpush2.bf16.msra.mxu0 0
      %146 = vmatprep.subr.bf16.mxu0 0
      %147 = vmatpush2.bf16.msra.mxu0 0
      %148 = vmatprep.subr.bf16.mxu0 0
      %149 = vmatpush2.bf16.msra.mxu0 0
      %150 = vmatprep.subr.bf16.mxu0 0
      %151 = vmatpush2.bf16.msra.mxu0 0
      %152 = vmatprep.subr.bf16.mxu0 0
      %153 = vmatpush2.bf16.msra.mxu0 0
      %154 = vmatprep.subr.bf16.mxu0 0
      %155 = vmatpush2.bf16.msra.mxu0 0
      %156 = vmatprep.mubr.bf16.mxu0 0
      %157 = vmatmul.mubr.bf16.gmra.mxu0 %v75
      %v158 = vpop.f32.mrf.mxu0
      %v159 = vadd.f32 %v64, %v158
      %v160 = vpop.f32.mrf.mxu0
      %v161 = vpop.f32.mrf.mxu0
      %v162 = vpop.f32.mrf.mxu0
      %163 = vdwg.mxu0
      %v164 = vadd.f32 %v74, %v159
      %vm165 = vcmp.ge.f32.partialorder %v164, 1.0
      %v166 = vsel %vm165, 1, 0
      %v167 = vcvt.s32.f32 %v166
      %v168 = vsub.f32 1.0, %v167
      %v169 = vmul.f32 %v164, %v168
    $region30: #{simulate.1} parent=1 // loop_footer
      %s72 = sadd.s32 1, %s68
    $region31: #{simulate.1} parent=1 // loop_footer_branch
      %67 = sbr.rel target = $region27
    $region32: #{simulate.1} parent=1 // loop_exit
      _
    %170 = vst [vmem:[#allocation7] sm:$0x1] %v73
    %171 = vst [vmem:[#allocation8] sm:$0x1] %v74
    // Predicated region
    $region33: #{simulate.1} parent=1 // pred_check
      _
    $region34: #{simulate.1} parent=1 // pred_check_branch
      %173 = sbr.rel (0) target = $region36
    $region35: #{simulate.1} parent=1 // pred_region
      %s175 = ssub.s32 16, 16
      %176 = vsyncadd [#allocation4], %s175
      %s178 = sshll.u32 [#allocation7], 4
      %s179 = int_to_ptr.vmem [resolvable:$true] %s178
      %181 = dma.vmem_to_hbm [thread:$0]  %s179, 16, %s4, [#allocation4]
    $region36: #{simulate.1} parent=1 // pred_fallthru
      _
    // Predicated region
    $region37: #{simulate.1} parent=1 // pred_check
      _
    $region38: #{simulate.1} parent=1 // pred_check_branch
      %183 = sbr.rel (0) target = $region40
    $region39: #{simulate.1} parent=1 // pred_region
      %s185 = ssub.s32 16, 16
      %186 = vsyncadd [#allocation9], %s185
      %s188 = sshll.u32 [#allocation8], 4
      %s189 = int_to_ptr.vmem [resolvable:$true] %s188
      %191 = dma.vmem_to_hbm [thread:$0]  %s189, 16, %s5, [#allocation9]
    $region40: #{simulate.1} parent=1 // pred_fallthru
      _
    // Predicated region
    $region41: #{simulate.1} parent=1 // pred_check
      _
    $region42: #{simulate.1} parent=1 // pred_check_branch
      %193 = sbr.rel (0) target = $region44
    $region43: #{simulate.1} parent=1 // pred_region
      %194 = dma.done [#allocation4], 16
    $region44: #{simulate.1} parent=1 // pred_fallthru
      _
    // Predicated region
    $region45: #{simulate.1} parent=1 // pred_check
      _
    $region46: #{simulate.1} parent=1 // pred_check_branch
      %196 = sbr.rel (0) target = $region48
    $region47: #{simulate.1} parent=1 // pred_region
      %197 = dma.done [#allocation9], 16
    $region48: #{simulate.1} parent=1 // pred_fallthru
      _
    %198 = vsyncpa [#allocation3], 1
    %199 = vsyncpa [#allocation6], 1
    %200 = vsyncpa [#allocation4], 1
    %201 = vsyncpa [#allocation9], 1

</llo_original>
